<compile_context>
chip_gen: v5e
topology: v5e:2x2
jax: 0.10.0
libtpu: 0.0.40
codegen_flags: <defaults>
</compile_context>

<pallas_src>
import math
import functools

import jax
import jax.numpy as jnp
from jax.experimental import pallas as pl
from jax.experimental.pallas import tpu as pltpu

INPUT_FEATURES = 784
OUTPUT_FEATURES = 10


def _round_up(n, m):
    return ((n + m - 1) // m) * m


def _cdiv(a, b):
    return -(-a // b)


def _mlp_logsoftmax_kernel(x_ref, w1_ref, w2_ref, o_ref, *, inv_sqrt_hidden):
    # x: (TB, 784); w1: (784, H); w2: (H, 10)  -- canonical k-major layouts.
    x = x_ref[...]
    h = jnp.dot(x, w1_ref[...], preferred_element_type=jnp.float32)   # (TB, H)
    h = jnp.maximum(h, 0.0)                                           # ReLU
    logits = jnp.dot(h, w2_ref[...], preferred_element_type=jnp.float32)  # (TB, 10)
    logits = logits * inv_sqrt_hidden                                 # / sqrt(H)
    # log_softmax over dim=1 (last axis), max-subtracted for stability.
    m = jnp.max(logits, axis=-1, keepdims=True)
    z = logits - m
    lse = jnp.log(jnp.sum(jnp.exp(z), axis=-1, keepdims=True))
    o_ref[...] = z - lse


def mnist_two_layer_fa_relu_forward(x, w1, w2, hidden_features, *, block_b=2048):
    """x: (B, 784) f32; w1: (H, 784) f32 (torch layout); w2: (10, H) f32."""
    b = x.shape[0]
    h = hidden_features
    assert x.shape == (b, INPUT_FEATURES)
    assert w1.shape == (h, INPUT_FEATURES)
    assert w2.shape == (OUTPUT_FEATURES, h)

    # One-time wrapper transposes -> canonical k-major matmuls in the kernel
    # (removes per-grid-step relayouts of the VMEM-resident weights).
    w1t = w1.T  # (784, H)
    w2t = w2.T  # (H, 10)

    # --- Padding / tiling policy ---------------------------------------------
    # Pad batch only to a multiple of 8 sublanes, then pick the number of tiles
    # so the tile size divides the padded batch with minimal slack. Force at
    # least 2 grid steps (when the batch allows) so the "parallel" batch axis
    # can shard across both TensorCores on v7x.
    padded_b8 = _round_up(b, 8)
    n_tiles = _cdiv(padded_b8, block_b)
    if padded_b8 >= 16:
        n_tiles = max(n_tiles, 2)
    tb = _round_up(_cdiv(padded_b8, n_tiles), 8)
    padded_b = tb * n_tiles
    if padded_b != b:
        x = jnp.pad(x, ((0, padded_b - b), (0, 0)))

    kernel = functools.partial(
        _mlp_logsoftmax_kernel,
        inv_sqrt_hidden=float(1.0 / math.sqrt(hidden_features)),
    )

    flops = (2 * padded_b * INPUT_FEATURES * h
             + 2 * padded_b * h * OUTPUT_FEATURES
             + 5 * padded_b * OUTPUT_FEATURES)          # relu/softmax elementwise
    bytes_accessed = 4 * (padded_b * INPUT_FEATURES     # X read
                          + h * INPUT_FEATURES          # W1 read
                          + OUTPUT_FEATURES * h         # W2 read
                          + padded_b * OUTPUT_FEATURES) # output write
    transcendentals = padded_b * (OUTPUT_FEATURES + 1)  # exp per class + log per row

    out = pl.pallas_call(
        kernel,
        out_shape=jax.ShapeDtypeStruct((padded_b, OUTPUT_FEATURES), jnp.float32),
        grid=(padded_b // tb,),
        in_specs=[
            pl.BlockSpec((tb, INPUT_FEATURES), lambda i: (i, 0)),      # X: streamed
            pl.BlockSpec((INPUT_FEATURES, h), lambda i: (0, 0)),       # W1^T: resident
            pl.BlockSpec((h, OUTPUT_FEATURES), lambda i: (0, 0)),      # W2^T: resident
        ],
        out_specs=pl.BlockSpec((tb, OUTPUT_FEATURES), lambda i: (i, 0)),
        compiler_params=pltpu.CompilerParams(
            dimension_semantics=("parallel",),
            vmem_limit_bytes=48 * 1024 * 1024,
        ),
        cost_estimate=pl.CostEstimate(
            flops=flops,
            transcendentals=transcendentals,
            bytes_accessed=bytes_accessed,
        ),
    )(x, w1t, w2t)
    return out[:b]


def _reference_forward(x, w1, w2, hidden_features):
    h = jnp.maximum(x @ w1.T, 0.0)
    pred = (h @ w2.T) / jnp.sqrt(jnp.float32(hidden_features))
    return jax.nn.log_softmax(pred, axis=1)


if __name__ == "__main__":
    batch = 8
    hidden_features = 32

    key = jax.random.PRNGKey(0)
    kx, k1, k2 = jax.random.split(key, 3)

    # Deterministic synthetic parameters (torch nn.Linear-style layout).
    x = jax.random.normal(kx, (batch, INPUT_FEATURES), dtype=jnp.float32)
    w1 = jax.random.normal(k1, (hidden_features, INPUT_FEATURES),
                           dtype=jnp.float32) * (1.0 / math.sqrt(INPUT_FEATURES))
    w2 = jax.random.normal(k2, (OUTPUT_FEATURES, hidden_features),
                           dtype=jnp.float32) * (1.0 / math.sqrt(hidden_features))

    out = mnist_two_layer_fa_relu_forward(x, w1, w2, hidden_features)
    out = jax.block_until_ready(out)

    ref = _reference_forward(x, w1, w2, hidden_features)
    assert out.shape == (batch, OUTPUT_FEATURES)
    assert jnp.allclose(out, ref, atol=1e-5, rtol=1e-5), "mismatch vs reference"

    # Also exercise an awkward batch size to validate the padding/tiling policy.
    batch2 = 13
    x2 = jax.random.normal(jax.random.PRNGKey(1), (batch2, INPUT_FEATURES),
                           dtype=jnp.float32)
    out2 = jax.block_until_ready(
        mnist_two_layer_fa_relu_forward(x2, w1, w2, hidden_features))
    ref2 = _reference_forward(x2, w1, w2, hidden_features)
    assert out2.shape == (batch2, OUTPUT_FEATURES)
    assert jnp.allclose(out2, ref2, atol=1e-5, rtol=1e-5), "mismatch vs reference (b=13)"

    print("KERNEL_OK")
</pallas_src>

<mosaic_0001>
module attributes {stable_mosaic.version = 11 : i64} {
  func.func @_mlp_logsoftmax_kernel(%arg0: i32, %arg1: memref<8x784xf32, #tpu.memory_space<vmem>>, %arg2: memref<784x32xf32, #tpu.memory_space<vmem>>, %arg3: memref<32x10xf32, #tpu.memory_space<vmem>>, %arg4: memref<8x10xf32, #tpu.memory_space<vmem>>) attributes {dimension_semantics = [#tpu.dimension_semantics<parallel>], iteration_bounds = array<i64: 1>, scalar_prefetch = 0 : i64, scratch_operands = 0 : i64, tpu.core_type = #tpu.core_type<tc>, window_params = [{transform_indices = @transform_0, window_bounds = array<i64: 8, 784>}, {pipeline_mode = #tpu.pipeline_mode<synchronous>, transform_indices = @transform_1, window_bounds = array<i64: 784, 32>}, {pipeline_mode = #tpu.pipeline_mode<synchronous>, transform_indices = @transform_2, window_bounds = array<i64: 32, 10>}, {transform_indices = @transform_3, window_bounds = array<i64: 8, 10>}]} {
    %c0 = arith.constant 0 : index
    %c0_0 = arith.constant 0 : index
    %0 = vector.load %arg1[%c0, %c0_0] : memref<8x784xf32, #tpu.memory_space<vmem>>, vector<8x784xf32>
    %c0_1 = arith.constant 0 : index
    %c0_2 = arith.constant 0 : index
    %1 = vector.load %arg2[%c0_1, %c0_2] : memref<784x32xf32, #tpu.memory_space<vmem>>, vector<784x32xf32>
    %cst = arith.constant dense<0.000000e+00> : vector<8x32xf32>
    %2 = tpu.matmul %0, %1, %cst {dimension_numbers = #tpu.dot_dimension_numbers<[1], [0], [0], [1], [0, 0, 1, 1], [], []>} : vector<8x784xf32>, vector<784x32xf32>, vector<8x32xf32> -> vector<8x32xf32>
    %cst_3 = arith.constant 0.000000e+00 : f32
    %3 = vector.broadcast %cst_3 : f32 to vector<8x32xf32>
    %4 = arith.maximumf %2, %3 : vector<8x32xf32>
    %c0_4 = arith.constant 0 : index
    %c0_5 = arith.constant 0 : index
    %5 = vector.load %arg3[%c0_4, %c0_5] : memref<32x10xf32, #tpu.memory_space<vmem>>, vector<32x10xf32>
    %cst_6 = arith.constant dense<0.000000e+00> : vector<8x10xf32>
    %6 = tpu.matmul %4, %5, %cst_6 {dimension_numbers = #tpu.dot_dimension_numbers<[1], [0], [0], [1], [0, 0, 1, 1], [], []>} : vector<8x32xf32>, vector<32x10xf32>, vector<8x10xf32> -> vector<8x10xf32>
    %cst_7 = arith.constant 0.176776692 : f32
    %7 = vector.broadcast %cst_7 : f32 to vector<8x10xf32>
    %8 = arith.mulf %6, %7 : vector<8x10xf32>
    %cst_8 = arith.constant dense<0xFF800000> : vector<8xf32>
    %9 = vector.multi_reduction <maximumf>, %8, %cst_8 [1] : vector<8x10xf32> to vector<8xf32>
    %10 = vector.shape_cast %9 : vector<8xf32> to vector<8x1xf32>
    %11 = vector.broadcast %10 : vector<8x1xf32> to vector<8x10xf32>
    %12 = arith.subf %8, %11 : vector<8x10xf32>
    %13 = math.exp %12 : vector<8x10xf32>
    %cst_9 = arith.constant dense<0.000000e+00> : vector<8xf32>
    %14 = vector.multi_reduction <add>, %13, %cst_9 [1] : vector<8x10xf32> to vector<8xf32>
    %15 = vector.shape_cast %14 : vector<8xf32> to vector<8x1xf32>
    %16 = math.log %15 : vector<8x1xf32>
    %17 = vector.broadcast %16 : vector<8x1xf32> to vector<8x10xf32>
    %18 = arith.subf %12, %17 : vector<8x10xf32>
    %c0_10 = arith.constant 0 : index
    %c0_11 = arith.constant 0 : index
    %19 = vector.load %arg4[%c0_10, %c0_11] : memref<8x10xf32, #tpu.memory_space<vmem>>, vector<8x10xf32>
    tpu.vector_store %arg4[%c0_10, %c0_11], %18 {strides = array<i32>} : memref<8x10xf32, #tpu.memory_space<vmem>>, vector<8x10xf32>,
    return
  }
  func.func @transform_0(%arg0: i32) -> (i32, i32) {
    %c0_i32 = arith.constant 0 : i32
    %c0_i32_0 = arith.constant 0 : i32
    return %arg0, %c0_i32 : i32, i32
  }
  func.func @transform_1(%arg0: i32) -> (i32, i32) {
    %c0_i32 = arith.constant 0 : i32
    %c0_i32_0 = arith.constant 0 : i32
    %c0_i32_1 = arith.constant 0 : i32
    return %c0_i32, %c0_i32_0 : i32, i32
  }
  func.func @transform_2(%arg0: i32) -> (i32, i32) {
    %c0_i32 = arith.constant 0 : i32
    %c0_i32_0 = arith.constant 0 : i32
    %c0_i32_1 = arith.constant 0 : i32
    return %c0_i32, %c0_i32_0 : i32, i32
  }
  func.func @transform_3(%arg0: i32) -> (i32, i32) {
    %c0_i32 = arith.constant 0 : i32
    %c0_i32_0 = arith.constant 0 : i32
    return %arg0, %c0_i32 : i32, i32
  }
}

</mosaic_0001>

<llo_original>
// kernel: tpu_custom_call.1
$region0: #{tpu_custom_call.1}
  #allocation0 [shape = 'u32[]', space=smem, size = 0x4, offset = 0x4, fixed_abs, tag = 'smem constant byte address 0x4 - core index']
  #allocation1 [shape = 'u32[72,128]{1,0:T(1,128)}', space=vmem, size = 0x9000, scoped, tag = 'internal scratch']
  %s0 = inlined_call_operand.vmem [shape: f32[8,784], index: 0, kind: input, shape index: {}]
  %s1 = inlined_call_operand.vmem [shape: f32[784,32], index: 1, kind: input, shape index: {}]
  %s2 = inlined_call_operand.vmem [shape: f32[32,10], index: 2, kind: input, shape index: {}]
  %s3 = inlined_call_operand.hbm [shape: f32[8,10], index: 3, kind: output, shape index: {}]
  %s4 = sld [smem:[#allocation0]]
  $region22: #{tpu_custom_call.1} parent=0
    _
  %s6 = ssub.s32 1, %s4
  %s7 = scalar_select 0, %s6, %s4
  $region1: #{tpu_custom_call.1} parent=0
    #allocation2 [shape = 'u8[4096]{0}', space=vmem, size = 0x1000, scoped, tag = 'output window, operand 0, single buffered']
    #allocation3 [shape = 's32[1]{0}', space=sflag, size = 0x4, scoped, tag = 'scoped memory for tpu_custom_call.1']
    %8 = vsyncpa [#allocation3], 0
    // Predicated region
    $region2: #{tpu_custom_call.1} parent=1 // pred_check
      _
    $region3: #{tpu_custom_call.1} parent=1 // pred_check_branch
      %10 = sbr.rel (0) target = $region5
    $region4: #{tpu_custom_call.1} parent=1 // pred_region
      _
    $region5: #{tpu_custom_call.1} parent=1 // pred_fallthru
      _
    // Predicated region
    $region6: #{tpu_custom_call.1} parent=1 // pred_check
      _
    $region7: #{tpu_custom_call.1} parent=1 // pred_check_branch
      %12 = sbr.rel (0) target = $region9
    $region8: #{tpu_custom_call.1} parent=1 // pred_region
      _
    $region9: #{tpu_custom_call.1} parent=1 // pred_fallthru
      _
    // Predicated region
    $region10: #{tpu_custom_call.1} parent=1 // pred_check
      _
    $region11: #{tpu_custom_call.1} parent=1 // pred_check_branch
      %14 = sbr.rel (0) target = $region13
    $region12: #{tpu_custom_call.1} parent=1 // pred_region
      _
    $region13: #{tpu_custom_call.1} parent=1 // pred_fallthru
      _
    %v15 = vld [vmem:[%s0] sm:$0xff]
    %v16 = vld [vmem:[%s0 + $0x8] sm:$0xff]
    %v17 = vld [vmem:[%s0 + $0x10] sm:$0xff]
    %v18 = vld [vmem:[%s0 + $0x18] sm:$0xff]
    %v19 = vld [vmem:[%s0 + $0x20] sm:$0xff]
    %v20 = vld [vmem:[%s0 + $0x28] sm:$0xff]
    %v21 = vld [vmem:[%s0 + $0x30] sm:$0xff]
    %v22 = vld [vmem:[%s1] sm:$0xff]
    %v23 = vld [vmem:[%s1 + $0x8] sm:$0xff]
    %v24 = vld [vmem:[%s1 + $0x10] sm:$0xff]
    %v25 = vld [vmem:[%s1 + $0x18] sm:$0xff]
    %v26 = vld [vmem:[%s1 + $0x20] sm:$0xff]
    %v27 = vld [vmem:[%s1 + $0x28] sm:$0xff]
    %v28 = vld [vmem:[%s1 + $0x30] sm:$0xff]
    %v29 = vld [vmem:[%s1 + $0x38] sm:$0xff]
    %v30 = vld [vmem:[%s1 + $0x40] sm:$0xff]
    %v31 = vld [vmem:[%s1 + $0x48] sm:$0xff]
    %v32 = vld [vmem:[%s1 + $0x50] sm:$0xff]
    %v33 = vld [vmem:[%s1 + $0x58] sm:$0xff]
    %v34 = vld [vmem:[%s1 + $0x60] sm:$0xff]
    %v35 = vld [vmem:[%s1 + $0x68] sm:$0xff]
    %v36 = vld [vmem:[%s1 + $0x70] sm:$0xff]
    %v37 = vld [vmem:[%s1 + $0x78] sm:$0xff]
    %v38 = vld [vmem:[%s1 + $0x80] sm:$0xff]
    %v39 = vld [vmem:[%s1 + $0x88] sm:$0xff]
    %v40 = vld [vmem:[%s1 + $0x90] sm:$0xff]
    %v41 = vld [vmem:[%s1 + $0x98] sm:$0xff]
    %v42 = vld [vmem:[%s1 + $0xa0] sm:$0xff]
    %v43 = vld [vmem:[%s1 + $0xa8] sm:$0xff]
    %v44 = vld [vmem:[%s1 + $0xb0] sm:$0xff]
    %v45 = vld [vmem:[%s1 + $0xb8] sm:$0xff]
    %v46 = vld [vmem:[%s1 + $0xc0] sm:$0xff]
    %v47 = vld [vmem:[%s1 + $0xc8] sm:$0xff]
    %v48 = vld [vmem:[%s1 + $0xd0] sm:$0xff]
    %v49 = vld [vmem:[%s1 + $0xd8] sm:$0xff]
    %v50 = vld [vmem:[%s1 + $0xe0] sm:$0xff]
    %v51 = vld [vmem:[%s1 + $0xe8] sm:$0xff]
    %v52 = vld [vmem:[%s1 + $0xf0] sm:$0xff]
    %v53 = vld [vmem:[%s1 + $0xf8] sm:$0xff]
    %v54 = vld [vmem:[%s1 + $0x100] sm:$0xff]
    %v55 = vld [vmem:[%s1 + $0x108] sm:$0xff]
    %v56 = vld [vmem:[%s1 + $0x110] sm:$0xff]
    %v57 = vld [vmem:[%s1 + $0x118] sm:$0xff]
    %v58 = vld [vmem:[%s1 + $0x120] sm:$0xff]
    %v59 = vld [vmem:[%s1 + $0x128] sm:$0xff]
    %v60 = vld [vmem:[%s1 + $0x130] sm:$0xff]
    %v61 = vld [vmem:[%s1 + $0x138] sm:$0xff]
    %v62 = vld [vmem:[%s1 + $0x140] sm:$0xff]
    %v63 = vld [vmem:[%s1 + $0x148] sm:$0xff]
    %v64 = vld [vmem:[%s1 + $0x150] sm:$0xff]
    %v65 = vld [vmem:[%s1 + $0x158] sm:$0xff]
    %v66 = vld [vmem:[%s1 + $0x160] sm:$0xff]
    %v67 = vld [vmem:[%s1 + $0x168] sm:$0xff]
    %v68 = vld [vmem:[%s1 + $0x170] sm:$0xff]
    %v69 = vld [vmem:[%s1 + $0x178] sm:$0xff]
    %v70 = vld [vmem:[%s1 + $0x180] sm:$0xff]
    %v71 = vld [vmem:[%s1 + $0x188] sm:$0xff]
    %v72 = vld [vmem:[%s1 + $0x190] sm:$0xff]
    %v73 = vld [vmem:[%s1 + $0x198] sm:$0xff]
    %v74 = vld [vmem:[%s1 + $0x1a0] sm:$0xff]
    %v75 = vld [vmem:[%s1 + $0x1a8] sm:$0xff]
    %v76 = vld [vmem:[%s1 + $0x1b0] sm:$0xff]
    %v77 = vld [vmem:[%s1 + $0x1b8] sm:$0xff]
    %v78 = vld [vmem:[%s1 + $0x1c0] sm:$0xff]
    %v79 = vld [vmem:[%s1 + $0x1c8] sm:$0xff]
    %v80 = vld [vmem:[%s1 + $0x1d0] sm:$0xff]
    %v81 = vld [vmem:[%s1 + $0x1d8] sm:$0xff]
    %v82 = vld [vmem:[%s1 + $0x1e0] sm:$0xff]
    %v83 = vld [vmem:[%s1 + $0x1e8] sm:$0xff]
    %v84 = vld [vmem:[%s1 + $0x1f0] sm:$0xff]
    %v85 = vld [vmem:[%s1 + $0x1f8] sm:$0xff]
    %v86 = vld [vmem:[%s1 + $0x200] sm:$0xff]
    %v87 = vld [vmem:[%s1 + $0x208] sm:$0xff]
    %v88 = vld [vmem:[%s1 + $0x210] sm:$0xff]
    %v89 = vld [vmem:[%s1 + $0x218] sm:$0xff]
    %v90 = vld [vmem:[%s1 + $0x220] sm:$0xff]
    %v91 = vld [vmem:[%s1 + $0x228] sm:$0xff]
    %v92 = vld [vmem:[%s1 + $0x230] sm:$0xff]
    %v93 = vld [vmem:[%s1 + $0x238] sm:$0xff]
    %v94 = vld [vmem:[%s1 + $0x240] sm:$0xff]
    %v95 = vld [vmem:[%s1 + $0x248] sm:$0xff]
    %v96 = vld [vmem:[%s1 + $0x250] sm:$0xff]
    %v97 = vld [vmem:[%s1 + $0x258] sm:$0xff]
    %v98 = vld [vmem:[%s1 + $0x260] sm:$0xff]
    %v99 = vld [vmem:[%s1 + $0x268] sm:$0xff]
    %v100 = vld [vmem:[%s1 + $0x270] sm:$0xff]
    %v101 = vld [vmem:[%s1 + $0x278] sm:$0xff]
    %v102 = vld [vmem:[%s1 + $0x280] sm:$0xff]
    %v103 = vld [vmem:[%s1 + $0x288] sm:$0xff]
    %v104 = vld [vmem:[%s1 + $0x290] sm:$0xff]
    %v105 = vld [vmem:[%s1 + $0x298] sm:$0xff]
    %v106 = vld [vmem:[%s1 + $0x2a0] sm:$0xff]
    %v107 = vld [vmem:[%s1 + $0x2a8] sm:$0xff]
    %v108 = vld [vmem:[%s1 + $0x2b0] sm:$0xff]
    %v109 = vld [vmem:[%s1 + $0x2b8] sm:$0xff]
    %v110 = vld [vmem:[%s1 + $0x2c0] sm:$0xff]
    %v111 = vld [vmem:[%s1 + $0x2c8] sm:$0xff]
    %v112 = vld [vmem:[%s1 + $0x2d0] sm:$0xff]
    %v113 = vld [vmem:[%s1 + $0x2d8] sm:$0xff]
    %v114 = vld [vmem:[%s1 + $0x2e0] sm:$0xff]
    %v115 = vld [vmem:[%s1 + $0x2e8] sm:$0xff]
    %v116 = vld [vmem:[%s1 + $0x2f0] sm:$0xff]
    %v117 = vld [vmem:[%s1 + $0x2f8] sm:$0xff]
    %v118 = vld [vmem:[%s1 + $0x300] sm:$0xff]
    %v119 = vld [vmem:[%s1 + $0x308] sm:$0xff]
    %vm120 = vcmask 130048
    %v122 = vsel %vm120, %v21, 0
    %124 = vmatpush.msra.mxu0 %v37
    %125 = vmatpush.msra.mxu0 %v36
    %126 = vmatpush.msra.mxu0 %v35
    %127 = vmatpush.msra.mxu0 %v34
    %128 = vmatpush.msra.mxu0 %v33
    %129 = vmatpush.msra.mxu0 %v32
    %130 = vmatpush.msra.mxu0 %v31
    %131 = vmatpush.msra.mxu0 %v30
    %132 = vmatpush.msra.mxu0 %v29
    %133 = vmatpush.msra.mxu0 %v28
    %134 = vmatpush.msra.mxu0 %v27
    %135 = vmatpush.msra.mxu0 %v26
    %136 = vmatpush.msra.mxu0 %v25
    %137 = vmatpush.msra.mxu0 %v24
    %138 = vmatpush.msra.mxu0 %v23
    %139 = vmatpush.msra.mxu0 %v22
    %140 = vmatmul.f32.gmra.mxu0 %v15
    %v141 = vpop.f32.mrf.mxu0
    %v142 = vadd.f32 0.0, %v141
    %143 = vdwg.mxu0
    %144 = vmatpush.msra.mxu0 %v53
    %145 = vmatpush.msra.mxu0 %v52
    %146 = vmatpush.msra.mxu0 %v51
    %147 = vmatpush.msra.mxu0 %v50
    %148 = vmatpush.msra.mxu0 %v49
    %149 = vmatpush.msra.mxu0 %v48
    %150 = vmatpush.msra.mxu0 %v47
    %151 = vmatpush.msra.mxu0 %v46
    %152 = vmatpush.msra.mxu0 %v45
    %153 = vmatpush.msra.mxu0 %v44
    %154 = vmatpush.msra.mxu0 %v43
    %155 = vmatpush.msra.mxu0 %v42
    %156 = vmatpush.msra.mxu0 %v41
    %157 = vmatpush.msra.mxu0 %v40
    %158 = vmatpush.msra.mxu0 %v39
    %159 = vmatpush.msra.mxu0 %v38
    %160 = vmatmul.f32.gmra.mxu0 %v16
    %v161 = vpop.f32.mrf.mxu0
    %v162 = vadd.f32 %v142, %v161
    %163 = vdwg.mxu0
    %164 = vmatpush.msra.mxu0 %v69
    %165 = vmatpush.msra.mxu0 %v68
    %166 = vmatpush.msra.mxu0 %v67
    %167 = vmatpush.msra.mxu0 %v66
    %168 = vmatpush.msra.mxu0 %v65
    %169 = vmatpush.msra.mxu0 %v64
    %170 = vmatpush.msra.mxu0 %v63
    %171 = vmatpush.msra.mxu0 %v62
    %172 = vmatpush.msra.mxu0 %v61
    %173 = vmatpush.msra.mxu0 %v60
    %174 = vmatpush.msra.mxu0 %v59
    %175 = vmatpush.msra.mxu0 %v58
    %176 = vmatpush.msra.mxu0 %v57
    %177 = vmatpush.msra.mxu0 %v56
    %178 = vmatpush.msra.mxu0 %v55
    %179 = vmatpush.msra.mxu0 %v54
    %180 = vmatmul.f32.gmra.mxu0 %v17
    %v181 = vpop.f32.mrf.mxu0
    %v182 = vadd.f32 %v162, %v181
    %183 = vdwg.mxu0
    %184 = vmatpush.msra.mxu0 %v85
    %185 = vmatpush.msra.mxu0 %v84
    %186 = vmatpush.msra.mxu0 %v83
    %187 = vmatpush.msra.mxu0 %v82
    %188 = vmatpush.msra.mxu0 %v81
    %189 = vmatpush.msra.mxu0 %v80
    %190 = vmatpush.msra.mxu0 %v79
    %191 = vmatpush.msra.mxu0 %v78
    %192 = vmatpush.msra.mxu0 %v77
    %193 = vmatpush.msra.mxu0 %v76
    %194 = vmatpush.msra.mxu0 %v75
    %195 = vmatpush.msra.mxu0 %v74
    %196 = vmatpush.msra.mxu0 %v73
    %197 = vmatpush.msra.mxu0 %v72
    %198 = vmatpush.msra.mxu0 %v71
    %199 = vmatpush.msra.mxu0 %v70
    %200 = vmatmul.f32.gmra.mxu0 %v18
    %v201 = vpop.f32.mrf.mxu0
    %v202 = vadd.f32 %v182, %v201
    %203 = vdwg.mxu0
    %204 = vmatpush.msra.mxu0 %v101
    %205 = vmatpush.msra.mxu0 %v100
    %206 = vmatpush.msra.mxu0 %v99
    %207 = vmatpush.msra.mxu0 %v98
    %208 = vmatpush.msra.mxu0 %v97
    %209 = vmatpush.msra.mxu0 %v96
    %210 = vmatpush.msra.mxu0 %v95
    %211 = vmatpush.msra.mxu0 %v94
    %212 = vmatpush.msra.mxu0 %v93
    %213 = vmatpush.msra.mxu0 %v92
    %214 = vmatpush.msra.mxu0 %v91
    %215 = vmatpush.msra.mxu0 %v90
    %216 = vmatpush.msra.mxu0 %v89
    %217 = vmatpush.msra.mxu0 %v88
    %218 = vmatpush.msra.mxu0 %v87
    %219 = vmatpush.msra.mxu0 %v86
    %220 = vmatmul.f32.gmra.mxu0 %v19
    %v221 = vpop.f32.mrf.mxu0
    %v222 = vadd.f32 %v202, %v221
    %223 = vdwg.mxu0
    %224 = vmatpush.msra.mxu0 %v117
    %225 = vmatpush.msra.mxu0 %v116
    %226 = vmatpush.msra.mxu0 %v115
    %227 = vmatpush.msra.mxu0 %v114
    %228 = vmatpush.msra.mxu0 %v113
    %229 = vmatpush.msra.mxu0 %v112
    %230 = vmatpush.msra.mxu0 %v111
    %231 = vmatpush.msra.mxu0 %v110
    %232 = vmatpush.msra.mxu0 %v109
    %233 = vmatpush.msra.mxu0 %v108
    %234 = vmatpush.msra.mxu0 %v107
    %235 = vmatpush.msra.mxu0 %v106
    %236 = vmatpush.msra.mxu0 %v105
    %237 = vmatpush.msra.mxu0 %v104
    %238 = vmatpush.msra.mxu0 %v103
    %239 = vmatpush.msra.mxu0 %v102
    %240 = vmatmul.f32.gmra.mxu0 %v20
    %v241 = vpop.f32.mrf.mxu0
    %v242 = vadd.f32 %v222, %v241
    %243 = vdwg.mxu0
    %244 = vmatpush.msra.mxu0 0.0
    %245 = vmatpush.msra.mxu0 0.0
    %246 = vmatpush.msra.mxu0 0.0
    %247 = vmatpush.msra.mxu0 0.0
    %248 = vmatpush.msra.mxu0 0.0
    %249 = vmatpush.msra.mxu0 0.0
    %250 = vmatpush.msra.mxu0 0.0
    %251 = vmatpush.msra.mxu0 0.0
    %252 = vmatpush.msra.mxu0 0.0
    %253 = vmatpush.msra.mxu0 0.0
    %254 = vmatpush.msra.mxu0 0.0
    %255 = vmatpush.msra.mxu0 0.0
    %256 = vmatpush.msra.mxu0 0.0
    %257 = vmatpush.msra.mxu0 0.0
    %258 = vmatpush.msra.mxu0 %v119
    %259 = vmatpush.msra.mxu0 %v118
    %260 = vmatmul.f32.gmra.mxu0 %v122
    %v261 = vpop.f32.mrf.mxu0
    %v262 = vadd.f32 %v242, %v261
    %263 = vdwg.mxu0
    %v264 = vmax.f32 %v262, 0.0
    %v265 = vld [vmem:[%s2] sm:$0xff]
    %v266 = vld [vmem:[%s2 + $0x8] sm:$0xff]
    %v267 = vld [vmem:[%s2 + $0x10] sm:$0xff]
    %v268 = vld [vmem:[%s2 + $0x18] sm:$0xff]
    %vm269 = vcmask 261120
    %v271 = vsel %vm269, %v264, 0
    %273 = vmatpush.msra.mxu0 0.0
    %274 = vmatpush.msra.mxu0 0.0
    %275 = vmatpush.msra.mxu0 0.0
    %276 = vmatpush.msra.mxu0 0.0
    %277 = vmatpush.msra.mxu0 0.0
    %278 = vmatpush.msra.mxu0 0.0
    %279 = vmatpush.msra.mxu0 0.0
    %280 = vmatpush.msra.mxu0 0.0
    %281 = vmatpush.msra.mxu0 0.0
    %282 = vmatpush.msra.mxu0 0.0
    %283 = vmatpush.msra.mxu0 0.0
    %284 = vmatpush.msra.mxu0 0.0
    %285 = vmatpush.msra.mxu0 %v268
    %286 = vmatpush.msra.mxu0 %v267
    %287 = vmatpush.msra.mxu0 %v266
    %288 = vmatpush.msra.mxu0 %v265
    %289 = vmatmul.f32.gmra.mxu0 %v271
    %v290 = vpop.f32.mrf.mxu0
    %v291 = vadd.f32 0.0, %v290
    %292 = vdwg.mxu0
    %v293 = vmul.f32 %v291, 0.17677669
    %vm294 = vcmask 80896
    %v295 = vsel %vm294, %v293, -inf
    %296 = vmax.xlane.f32.xlu0 %v295
    %v297 = vpop.xlane.xlu0 %296
    %v298 = vsub.f32 %v293, %v297
    %v299 = vmul.f32 %v298, 1.442695
    %v300 = vpow.pop %v299
    %v301 = vsel %vm294, %v300, 0.0
    %302 = vadd.xlane.f32.xlu0 %v301
    %v303 = vpop.xlane.xlu0 %302
    %v304 = vlog2.pop %v303
    %v305 = vmul.f32 %v304, 0.6931472
    %v306 = vsub.f32 %v298, %v305
    %307 = vst.msk [vmem:[#allocation2] sm:$0xff] %vm294, %v306
    // Predicated region
    $region14: #{tpu_custom_call.1} parent=1 // pred_check
      _
    $region15: #{tpu_custom_call.1} parent=1 // pred_check_branch
      %309 = sbr.rel (0) target = $region17
    $region16: #{tpu_custom_call.1} parent=1 // pred_region
      %311 = vsyncadd [#allocation3], 0
      %s313 = sshll.u32 [#allocation2], 4
      %s314 = int_to_ptr.vmem [resolvable:$true] %s313
      %s315 = sshll.u32 %s3, 4
      %s316 = int_to_ptr.hbm [resolvable:$true] %s315
      %318 = dma.vmem_to_hbm [thread:$0]  %s314, 128, %s316, [#allocation3]
    $region17: #{tpu_custom_call.1} parent=1 // pred_fallthru
      _
    // Predicated region
    $region18: #{tpu_custom_call.1} parent=1 // pred_check
      _
    $region19: #{tpu_custom_call.1} parent=1 // pred_check_branch
      %320 = sbr.rel (0) target = $region21
    $region20: #{tpu_custom_call.1} parent=1 // pred_region
      %322 = dma.done [#allocation3], 128
    $region21: #{tpu_custom_call.1} parent=1 // pred_fallthru
      _
    %323 = vsyncpa [#allocation3], 1

</llo_original>
